<compile_context>
chip_gen: v5e
topology: v5e:2x2
jax: 0.10.0
libtpu: 0.0.40
codegen_flags: <defaults>
</compile_context>

<pallas_src>
import jax
import jax.numpy as jnp
from jax.experimental import pallas as pl
from jax.experimental.pallas import tpu as pltpu


def _default_max_tile_elems():
    """Generation-aware per-output-buffer tile budget (in elements)."""
    try:
        kind = jax.devices()[0].device_kind.lower()
    except Exception:
        kind = ""
    if "v5 lite" in kind or "v5lite" in kind or "v5e" in kind:
        return 512 * 1024          # 2 MiB: fits v5e's 16 MiB scoped-VMEM default
    if "v6" in kind or "v7" in kind:
        return 2 * 1024 * 1024     # 8 MiB: amortizes ~0.35us/step on fast HBM
    return 1024 * 1024             # 4 MiB: conservative elsewhere


def _divisors(n):
    ds = set()
    i = 1
    while i * i <= n:
        if n % i == 0:
            ds.add(i)
            ds.add(n // i)
        i += 1
    return sorted(ds)


def _plan(L, N, max_tile_elems):
    """Pick (k, rows): tail_len = L**k lanes per row, `rows` head rows per tile."""
    # Tail exponent k: smallest k with L**k a multiple of 128 (lane-dense,
    # unmasked output stores).  Otherwise (no power of L hits a multiple of
    # 128) take the largest k with L**k <= tail_cap; the cap is raised well
    # above 2048 per review so the masked tail fraction of each row is small.
    tail_cap = max(8192, min(max_tile_elems, 64 * 1024))
    k = None
    for kk in range(1, N + 1):
        if (L ** kk) % 128 == 0:
            k = kk
            break
    if k is None:
        k = 1
        while k < N and L ** (k + 1) <= tail_cap:
            k += 1
    tail_len = L ** k
    head_len = L ** (N - k)

    # Rows per tile: a divisor of head_len, multiple of 8 (sublane constraint,
    # unless it spans the full head extent), as large as possible within the
    # VMEM budget.
    target = max(1, max_tile_elems // tail_len)
    if head_len <= target:
        rows = head_len
    else:
        aligned = [d for d in _divisors(head_len) if d % 8 == 0]
        under = [d for d in aligned if d <= target]
        if under:
            rows = max(under)
        elif aligned:
            # No aligned divisor fits the budget; take the smallest aligned one.
            # vmem_limit_bytes below is derived from the actual tile size, so
            # this cannot silently exceed the scoped-VMEM default.
            rows = min(aligned)
        else:
            # Odd L: no divisor of head_len is a multiple of 8 -> full extent.
            rows = head_len
    n_tiles = head_len // rows
    return k, tail_len, head_len, rows, n_tiles


def _kron_chain(factors):
    """(C, n, L) -> (C, L**n): chained einsum('i,j->ij').reshape(-1) per
    channel, first factor's index slowest-varying (matches the torch loop)."""
    C = factors.shape[0]
    r = factors[:, 0, :]
    for a in range(1, factors.shape[1]):
        r = (r[:, :, None] * factors[:, a, :][:, None, :]).reshape(C, -1)
    return r


def _tpe_kernel(head_ref, tail_ref, out_ref):
    """One (channel, head-tile) grid step: a single fused broadcast
    multiply-and-store of a (rows, tail_len) output slab."""
    # head_ref: (1, rows, 1), tail_ref: (1, 1, tail_len),
    # out_ref : (1, rows, tail_len)
    out_ref[0] = (head_ref[0] * tail_ref[0]).astype(out_ref.dtype)


def tensor_product_expansion(x, bias, *, max_tile_elems=None):
    """x, bias: (C, N, L) -> (C, L, L, ..., L) (N trailing L axes)."""
    assert x.shape == bias.shape
    C, N, L = x.shape
    assert N >= 1 and L >= 1
    if max_tile_elems is None:
        max_tile_elems = _default_max_tile_elems()

    k, tail_len, head_len, rows, n_tiles = _plan(L, N, max_tile_elems)

    # Grid-invariant, channel-only precompute (KB-sized; review Option A).
    v = x + bias                                        # (C, N, L)
    tail = _kron_chain(v[:, N - k:, :])                 # (C, tail_len)
    if N - k > 0:
        head = _kron_chain(v[:, : N - k, :])            # (C, head_len)
    else:
        head = jnp.ones((C, 1), dtype=v.dtype)
    head = head.reshape(C, head_len, 1)
    tail = tail.reshape(C, 1, tail_len)

    # VMEM budget derived from the actual tile: double-buffered output plus
    # lane/sublane-padded head/tail blocks, clamped to a range that is safe on
    # every generation (>= 32 MiB scoped, <= v7x's 64 MiB physical).
    itemsize = jnp.dtype(x.dtype).itemsize
    tile_bytes = rows * tail_len * itemsize
    head_buf_bytes = rows * 128 * itemsize              # lane dim 1 pads to 128
    tail_buf_bytes = 8 * max(tail_len, 128) * itemsize  # sublane dim 1 pads to 8
    vmem_bytes = 2 * (tile_bytes + head_buf_bytes + tail_buf_bytes) + (2 << 20)
    vmem_limit = int(min(max(vmem_bytes, 32 << 20), 64 << 20))

    head_spec = pl.BlockSpec((1, rows, 1), lambda c, t: (c, t, 0))
    tail_spec = pl.BlockSpec((1, 1, tail_len), lambda c, t: (c, 0, 0))
    out_spec = pl.BlockSpec((1, rows, tail_len), lambda c, t: (c, t, 0))

    flat = pl.pallas_call(
        _tpe_kernel,
        out_shape=jax.ShapeDtypeStruct((C, head_len, tail_len), x.dtype),
        grid_spec=pltpu.PrefetchScalarGridSpec(
            num_scalar_prefetch=0,
            grid=(C, n_tiles),
            in_specs=[head_spec, tail_spec],
            out_specs=out_spec,
        ),
        compiler_params=pltpu.CompilerParams(
            dimension_semantics=("parallel", "parallel"),
            vmem_limit_bytes=vmem_limit,
        ),
    )(head, tail)
    # Free reshape: (C, head_len, tail_len) and (C, L, ..., L) share HBM layout.
    return flat.reshape((C,) + (L,) * N)


def _reference(x, bias):
    # Direct transcription of the PyTorch forward in plain JAX (for checking).
    v = x + bias
    C, N, L = x.shape
    outs = []
    for c in range(C):
        r = v[c, 0]
        for n in range(1, N):
            r = jnp.einsum("i,j->ij", r, v[c, n]).reshape(-1)
        outs.append(r)
    return jnp.stack(outs).reshape((C,) + (L,) * N)


def _check(C, N, L, key, **kwargs):
    kx, kb = jax.random.split(key)
    x = jax.random.normal(kx, (C, N, L), dtype=jnp.float32)
    # The module's __init__ uses zeros for the bias; use a small non-trivial
    # bias here so the bias-add path is actually exercised.
    bias = 0.1 * jax.random.normal(kb, (C, N, L), dtype=jnp.float32)
    out = jax.block_until_ready(tensor_product_expansion(x, bias, **kwargs))
    ref = _reference(x, bias)
    assert out.shape == (C,) + (L,) * N
    assert jnp.allclose(out, ref, atol=1e-5, rtol=1e-5), (C, N, L)


if __name__ == "__main__":
    C, N, K, L = 2, 3, 4, 8   # K is unused by forward(); kept for parity
    key = jax.random.PRNGKey(0)
    k0, k1, k2, k3 = jax.random.split(key, 4)

    # Main shape implied by the module.
    _check(C, N, L, k0)
    # Multi-row head path (head_len > 1, single tile per channel).
    _check(2, 4, 8, k1)
    # Per-channel output tiling (n_tiles > 1) with both grid axes parallel.
    _check(2, 5, 8, k2, max_tile_elems=4096)
    # N=1 edge case with a non-multiple-of-128 tail (masked-store fallback).
    _check(2, 1, 8, k3)

    print("KERNEL_OK")
</pallas_src>

<mosaic_0001>
module attributes {stable_mosaic.version = 11 : i64} {
  func.func @_tpe_kernel(%arg0: i32, %arg1: i32, %arg2: memref<1x1x1xf32, #tpu.memory_space<vmem>>, %arg3: memref<1x1x512xf32, #tpu.memory_space<vmem>>, %arg4: memref<1x1x512xf32, #tpu.memory_space<vmem>>) attributes {dimension_semantics = [#tpu.dimension_semantics<parallel>, #tpu.dimension_semantics<parallel>], iteration_bounds = array<i64: 2, 1>, scalar_prefetch = 0 : i64, scratch_operands = 0 : i64, tpu.core_type = #tpu.core_type<tc>, window_params = [{transform_indices = @transform_0, window_bounds = array<i64: 1, 1, 1>}, {transform_indices = @transform_1, window_bounds = array<i64: 1, 1, 512>}, {transform_indices = @transform_2, window_bounds = array<i64: 1, 1, 512>}]} {
    %c0 = arith.constant 0 : index
    %c0_0 = arith.constant 0 : index
    %c0_1 = arith.constant 0 : index
    %0 = vector.load %arg2[%c0, %c0_0, %c0_1] : memref<1x1x1xf32, #tpu.memory_space<vmem>>, vector<1x1x1xf32>
    %1 = vector.shape_cast %0 : vector<1x1x1xf32> to vector<1x1xf32>
    %c0_2 = arith.constant 0 : index
    %c0_3 = arith.constant 0 : index
    %c0_4 = arith.constant 0 : index
    %2 = vector.load %arg3[%c0_2, %c0_3, %c0_4] : memref<1x1x512xf32, #tpu.memory_space<vmem>>, vector<1x1x512xf32>
    %3 = vector.shape_cast %2 : vector<1x1x512xf32> to vector<1x512xf32>
    %4 = vector.broadcast %1 : vector<1x1xf32> to vector<1x512xf32>
    %5 = arith.mulf %4, %3 : vector<1x512xf32>
    %c0_5 = arith.constant 0 : index
    %c0_6 = arith.constant 0 : index
    %c0_7 = arith.constant 0 : index
    %6 = vector.load %arg4[%c0_5, %c0_6, %c0_7] : memref<1x1x512xf32, #tpu.memory_space<vmem>>, vector<1x1x512xf32>
    %7 = vector.shape_cast %6 : vector<1x1x512xf32> to vector<1x512xf32>
    %8 = vector.shape_cast %5 : vector<1x512xf32> to vector<1x1x512xf32>
    tpu.vector_store %arg4[%c0_5, %c0_6, %c0_7], %8 {strides = array<i32>} : memref<1x1x512xf32, #tpu.memory_space<vmem>>, vector<1x1x512xf32>,
    return
  }
  func.func @transform_0(%arg0: i32, %arg1: i32) -> (i32, i32, i32) {
    %c0_i32 = arith.constant 0 : i32
    %c0_i32_0 = arith.constant 0 : i32
    return %arg0, %arg1, %c0_i32 : i32, i32, i32
  }
  func.func @transform_1(%arg0: i32, %arg1: i32) -> (i32, i32, i32) {
    %c0_i32 = arith.constant 0 : i32
    %c0_i32_0 = arith.constant 0 : i32
    %c0_i32_1 = arith.constant 0 : i32
    return %arg0, %c0_i32, %c0_i32_0 : i32, i32, i32
  }
  func.func @transform_2(%arg0: i32, %arg1: i32) -> (i32, i32, i32) {
    %c0_i32 = arith.constant 0 : i32
    %c0_i32_0 = arith.constant 0 : i32
    return %arg0, %arg1, %c0_i32 : i32, i32, i32
  }
}

</mosaic_0001>

<llo_original>
// kernel: tpu_custom_call.1
$region0: #{tpu_custom_call.1}
  #allocation0 [shape = 'u32[]', space=smem, size = 0x4, offset = 0x4, fixed_abs, tag = 'smem constant byte address 0x4 - core index']
  #allocation1 [shape = 'u32[72,128]{1,0:T(1,128)}', space=vmem, size = 0x9000, scoped, tag = 'internal scratch']
  %s0 = inlined_call_operand.vmem [shape: f32[2,1,1], index: 0, kind: input, shape index: {}]
  %s1 = inlined_call_operand.hbm [shape: f32[2,1,512], index: 1, kind: input, shape index: {}]
  %s2 = inlined_call_operand.hbm [shape: f32[2,1,512], index: 2, kind: output, shape index: {}]
  %s3 = sld [smem:[#allocation0]]
  $region45: #{tpu_custom_call.1} parent=0
    _
  %s5 = ssub.s32 1, %s3
  %s6 = scalar_select 0, %s5, %s3
  $region1: #{tpu_custom_call.1} parent=0
    #allocation2 [shape = 'u8[4096]{0}', space=vmem, size = 0x1000, scoped, tag = 'input window, operand 1']
    #allocation3 [shape = 's32[2]{0}', space=sflag, size = 0x8, scoped, tag = 'scoped memory for tpu_custom_call.1']
    #allocation4 [shape = 's32[2]{0}', space=sflag, size = 0x8, scoped, tag = 'scoped memory for tpu_custom_call.1']
    #allocation5 [shape = 'u8[4096]{0}', space=vmem, size = 0x1000, scoped, tag = 'output window, operand 0']
    %7 = vsyncpa [#allocation3], 0
    %s8 = scalar_lea.sflag [#allocation3], 1
    %9 = vsyncpa %s8, 0
    %10 = vsyncpa [#allocation4], 0
    %s11 = scalar_lea.sflag [#allocation4], 1
    %12 = vsyncpa %s11, 0
    loop: start=0, step=1, limit=4
    $region2: #{tpu_custom_call.1} parent=1 // loop_pre_header
      _
    $region3: #{tpu_custom_call.1} parent=1 // loop_header
      %s14 = sphi 0, %s18
      %p15 = scmp.ge.s32.totalorder %s14, 4
      %s21 = sphi 0, %s33
      %s22 = sphi 0, %s29
      %s23 = sphi 0, %s21
      %s24 = sphi 0, %s22
      %s25 = sphi 0, %s23
      %s26 = sphi 0, %s24
      %s38 = sphi 0, %s40
      %s41 = sphi 0, %s38
      %s42 = sphi 0, %s41
      %s58 = sphi 0, %s42
      %s64 = sphi 0, %s66
      %s67 = sphi 0, %s64
      %s68 = sphi 0, %s67
      %s84 = sphi 0, %s68
      %s92 = sphi 0, %s94
      %s95 = sphi 0, %s92
      %s96 = sphi 0, %s95
      %s112 = sphi 0, %s96
    $region4: #{tpu_custom_call.1} parent=1 // loop_header_branch
      %17 = sbr.rel (%p15) target = $region8
    $region5: #{tpu_custom_call.1} parent=1 // loop_body
      %s19 = ssub.s32 %s14, 1
      %s20 = ssub.s32 %s14, 2
      %s27 = sadd.s32 1, %s22
      %p28 = scmp.ge.s32.totalorder %s27, 1
      %s29 = scalar_select %p28, 0, %s27
      %s30 = sadd.s32 1, %s21
      %s31 = scalar_select %p28, %s30, %s21
      %p32 = scmp.ge.s32.totalorder %s31, 2
      %s33 = scalar_select %p32, 0, %s31
      %s34 = ssub.s32 %s21, %s33
      %s35 = ssub.s32 %s22, %s29
      %s36 = sor.u32 %s34, %s35
      %p37 = scmp.eq.s32.totalorder %s36, 0
      %s39 = sadd.s32 %s38, 1
      %s40 = scalar_select %p37, %s38, %s39
      %p43 = pneg %p37
      %p44 = scmp.eq.s32.totalorder %s14, 1
      %p45 = por %p43, %p44
      %p46 = scmp.ne.s32.totalorder %s38, %s41
      %p47 = scmp.eq.s32.totalorder %s14, 0
      %p48 = por %p46, %p47
      %p49 = scmp.ne.s32.totalorder %s38, %s41
      %p50 = scmp.eq.s32.totalorder %s19, 1
      %p51 = por %p49, %p50
      %p52 = scmp.ne.s32.totalorder %s41, %s42
      %p53 = scmp.eq.s32.totalorder %s19, 0
      %p54 = por %p52, %p53
      %p55 = scmp.ne.s32.totalorder %s41, %s42
      %p56 = scmp.eq.s32.totalorder %s20, 1
      %p57 = por %p55, %p56
      %p59 = scmp.ne.s32.totalorder %s42, %s58
      %p60 = scmp.eq.s32.totalorder %s20, 0
      %p61 = por %p59, %p60
      %s62 = ssub.s32 %s21, %s33
      %p63 = scmp.eq.s32.totalorder %s62, 0
      %s65 = sadd.s32 %s64, 1
      %s66 = scalar_select %p63, %s64, %s65
      %p69 = pneg %p63
      %p70 = scmp.eq.s32.totalorder %s14, 1
      %p71 = por %p69, %p70
      %p72 = scmp.ne.s32.totalorder %s64, %s67
      %p73 = scmp.eq.s32.totalorder %s14, 0
      %p74 = por %p72, %p73
      %p75 = scmp.ne.s32.totalorder %s64, %s67
      %p76 = scmp.eq.s32.totalorder %s19, 1
      %p77 = por %p75, %p76
      %p78 = scmp.ne.s32.totalorder %s67, %s68
      %p79 = scmp.eq.s32.totalorder %s19, 0
      %p80 = por %p78, %p79
      %p81 = scmp.ne.s32.totalorder %s67, %s68
      %p82 = scmp.eq.s32.totalorder %s20, 1
      %p83 = por %p81, %p82
      %p85 = scmp.ne.s32.totalorder %s68, %s84
      %p86 = scmp.eq.s32.totalorder %s20, 0
      %p87 = por %p85, %p86
      %s88 = ssub.s32 %s21, %s33
      %s89 = ssub.s32 %s22, %s29
      %s90 = sor.u32 %s88, %s89
      %p91 = scmp.eq.s32.totalorder %s90, 0
      %s93 = sadd.s32 %s92, 1
      %s94 = scalar_select %p91, %s92, %s93
      %p97 = pneg %p91
      %p98 = scmp.eq.s32.totalorder %s14, 1
      %p99 = por %p97, %p98
      %p100 = scmp.ne.s32.totalorder %s92, %s95
      %p101 = scmp.eq.s32.totalorder %s14, 0
      %p102 = por %p100, %p101
      %p103 = scmp.ne.s32.totalorder %s92, %s95
      %p104 = scmp.eq.s32.totalorder %s19, 1
      %p105 = por %p103, %p104
      %p106 = scmp.ne.s32.totalorder %s95, %s96
      %p107 = scmp.eq.s32.totalorder %s19, 0
      %p108 = por %p106, %p107
      %p109 = scmp.ne.s32.totalorder %s95, %s96
      %p110 = scmp.eq.s32.totalorder %s20, 1
      %p111 = por %p109, %p110
      %p113 = scmp.ne.s32.totalorder %s96, %s112
      %p114 = scmp.eq.s32.totalorder %s20, 0
      %p115 = por %p113, %p114
      %p116 = scmp.le.s32.totalorder 1, %s14
      %p117 = scmp.lt.s32.totalorder %s14, 3
      %p118 = pnand %p116, %p117
      %p119 = pneg %p118
      // Predicated region
      $region9: #{tpu_custom_call.1} parent=5 // pred_check
        _
      $region10: #{tpu_custom_call.1} parent=5 // pred_check_branch
        %121 = sbr.rel (%p118) target = $region12
      $region11: #{tpu_custom_call.1} parent=5 // pred_region
        %s122 = ssub.s32 %s14, 1
      $region12: #{tpu_custom_call.1} parent=5 // pred_fallthru
        _
      %p123 = scmp.lt.s32.totalorder %s14, 2
      // Predicated region
      $region13: #{tpu_custom_call.1} parent=5 // pred_check
        %p124 = pneg %p123
      $region14: #{tpu_custom_call.1} parent=5 // pred_check_branch
        %126 = sbr.rel (%p124) target = $region16
      $region15: #{tpu_custom_call.1} parent=5 // pred_region
        // Predicated region
        $region17: #{tpu_custom_call.1} parent=15 // pred_check
          %p127 = pneg %p48
        $region18: #{tpu_custom_call.1} parent=15 // pred_check_branch
          %129 = sbr.rel (%p127) target = $region20
        $region19: #{tpu_custom_call.1} parent=15 // pred_region
          %p130 = scmp.lt.s32.totalorder %s21, 1
          %s131 = scalar_select %p130, %s21, 1
          %p132 = scmp.lt.s32.totalorder %s22, 0
          %s133 = scalar_select %p132, %s22, 0
          %s134 = sadd.s32 %s133, %s131
          %s135 = scalar_lea.vmem %s0, %s134
        $region20: #{tpu_custom_call.1} parent=15 // pred_fallthru
          _
        // Predicated region
        $region21: #{tpu_custom_call.1} parent=15 // pred_check
          %p136 = pneg %p74
        $region22: #{tpu_custom_call.1} parent=15 // pred_check_branch
          %138 = sbr.rel (%p136) target = $region24
        $region23: #{tpu_custom_call.1} parent=15 // pred_region
          %s139 = sand.u32 %s64, 1
          %s140 = scalar_lea.sflag [#allocation3], %s139
          %s141 = sand.u32 %s64, 1
          %s142 = smul.addr %s141, 4
          %s143 = scalar_lea.vmem [#allocation2], %s142
          %145 = vsyncadd %s140, 0
          %s146 = smul.addr %s21, 4
          %s147 = scalar_lea.hbm %s1, %s146
          %s149 = sshll.u32 %s147, 4
          %s150 = int_to_ptr.hbm [resolvable:$true] %s149
          %s151 = sshll.u32 %s143, 4
          %s152 = int_to_ptr.vmem [resolvable:$true] %s151
          %154 = dma.hbm_to_vmem [thread:$0]  %s150, 64, %s152, %s140
        $region24: #{tpu_custom_call.1} parent=15 // pred_fallthru
          _
      $region16: #{tpu_custom_call.1} parent=5 // pred_fallthru
        _
      %p155 = scmp.le.s32.totalorder 1, %s14
      %p156 = scmp.lt.s32.totalorder %s14, 3
      %p157 = pnand %p155, %p156
      %p158 = pneg %p157
      // Predicated region
      $region25: #{tpu_custom_call.1} parent=5 // pred_check
        _
      $region26: #{tpu_custom_call.1} parent=5 // pred_check_branch
        %160 = sbr.rel (%p157) target = $region28
      $region27: #{tpu_custom_call.1} parent=5 // pred_region
        %s161 = ssub.s32 %s14, 1
        %s162 = sand.u32 %s67, 1
        %s163 = scalar_lea.sflag [#allocation3], %s162
        %s164 = sand.u32 %s67, 1
        %s165 = smul.addr %s164, 4
        %s166 = scalar_lea.vmem [#allocation2], %s165
        // Predicated region
        $region29: #{tpu_custom_call.1} parent=27 // pred_check
          %p167 = pneg %p80
        $region30: #{tpu_custom_call.1} parent=27 // pred_check_branch
          %169 = sbr.rel (%p167) target = $region32
        $region31: #{tpu_custom_call.1} parent=27 // pred_region
          %171 = dma.done %s163, 64
        $region32: #{tpu_custom_call.1} parent=27 // pred_fallthru
          _
        %p172 = scmp.lt.s32.totalorder %s23, 1
        %s173 = scalar_select %p172, %s23, 1
        %p174 = scmp.lt.s32.totalorder %s24, 0
        %s175 = scalar_select %p174, %s24, 0
        %s176 = sadd.s32 %s175, %s173
        %s177 = scalar_lea.vmem %s0, %s176
        %p178 = pneg %p54
        %p179 = pneg %p51
        %s180 = sand.u32 %s67, 1
        %s181 = scalar_lea.sflag [#allocation3], %s180
        %s182 = sand.u32 %s67, 1
        %s183 = smul.addr %s182, 4
        %s184 = scalar_lea.vmem [#allocation2], %s183
        %p185 = pneg %p80
        %p186 = pneg %p77
        %p187 = pneg %p108
        %p188 = pneg %p105
        %s189 = sand.u32 %s95, 1
        %s190 = scalar_lea.sflag [#allocation4], %s189
        %s191 = sand.u32 %s95, 1
        %s192 = smul.addr %s191, 4
        %s193 = scalar_lea.vmem [#allocation5], %s192
        %p194 = scmp.lt.s32.totalorder %s23, 1
        %s195 = scalar_select %p194, %s23, 1
        %p196 = scmp.lt.s32.totalorder %s24, 0
        %s197 = scalar_select %p196, %s24, 0
        %s198 = sadd.s32 %s197, %s195
        %s199 = scalar_lea.vmem %s0, %s198
        %v200 = vld [vmem:[%s199] sm:$0x1]
        %v201 = vld [vmem:[%s166] sm:$0xf]
        %203 = vset.pattern.permute.xlu0 0
        %204 = vperm.xlu0 %203, %v200
        %v205 = vpop.permute.xlu0 %204
        %v207 = vperm.slane %v205, 0
        %v208 = vmul.f32 %v207, %v201
        %v209 = vlaneseq
        %vm210 = vcmp.ge.s32.totalorder %v209, 0
        %vm211 = vcmp.lt.s32.totalorder %v209, 512
        %vm212 = vmand %vm210, %vm211
        %213 = vst.msk [vmem:[%s193] sm:$0xf] %vm212, %v208
        %s214 = sand.u32 %s95, 1
        %s215 = scalar_lea.sflag [#allocation4], %s214
        %s216 = sand.u32 %s95, 1
        %s217 = smul.addr %s216, 4
        %s218 = scalar_lea.vmem [#allocation5], %s217
        // Predicated region
        $region33: #{tpu_custom_call.1} parent=27 // pred_check
          %p219 = pneg %p105
        $region34: #{tpu_custom_call.1} parent=27 // pred_check_branch
          %221 = sbr.rel (%p219) target = $region36
        $region35: #{tpu_custom_call.1} parent=27 // pred_region
          %223 = vsyncadd %s215, 0
          %s224 = smul.addr %s24, 4
          %s225 = smul.addr %s23, 4
          %s226 = sadd.s32 %s224, %s225
          %s227 = scalar_lea.hbm %s2, %s226
          %s229 = sshll.u32 %s218, 4
          %s230 = int_to_ptr.vmem [resolvable:$true] %s229
          %s231 = sshll.u32 %s227, 4
          %s232 = int_to_ptr.hbm [resolvable:$true] %s231
          %234 = dma.vmem_to_hbm [thread:$0]  %s230, 64, %s232, %s215
        $region36: #{tpu_custom_call.1} parent=27 // pred_fallthru
          _
      $region28: #{tpu_custom_call.1} parent=5 // pred_fallthru
        _
      %p235 = scmp.le.s32.totalorder 2, %s14
      // Predicated region
      $region37: #{tpu_custom_call.1} parent=5 // pred_check
        %p236 = pneg %p235
      $region38: #{tpu_custom_call.1} parent=5 // pred_check_branch
        %238 = sbr.rel (%p236) target = $region40
      $region39: #{tpu_custom_call.1} parent=5 // pred_region
        %s239 = ssub.s32 %s14, 2
        // Predicated region
        $region41: #{tpu_custom_call.1} parent=39 // pred_check
          %p240 = pneg %p111
        $region42: #{tpu_custom_call.1} parent=39 // pred_check_branch
          %242 = sbr.rel (%p240) target = $region44
        $region43: #{tpu_custom_call.1} parent=39 // pred_region
          %s243 = sand.u32 %s96, 1
          %s244 = scalar_lea.sflag [#allocation4], %s243
          %s245 = sand.u32 %s96, 1
          %s246 = smul.addr %s245, 4
          %s247 = scalar_lea.vmem [#allocation5], %s246
          %249 = dma.done %s244, 64
        $region44: #{tpu_custom_call.1} parent=39 // pred_fallthru
          _
      $region40: #{tpu_custom_call.1} parent=5 // pred_fallthru
        _
    $region6: #{tpu_custom_call.1} parent=1 // loop_footer
      %s18 = sadd.s32 1, %s14
    $region7: #{tpu_custom_call.1} parent=1 // loop_footer_branch
      %13 = sbr.rel target = $region3
    $region8: #{tpu_custom_call.1} parent=1 // loop_exit
      _
    %250 = vsyncpa [#allocation3], 1
    %s251 = scalar_lea.sflag [#allocation3], 1
    %252 = vsyncpa %s251, 1
    %253 = vsyncpa [#allocation4], 1
    %s254 = scalar_lea.sflag [#allocation4], 1
    %255 = vsyncpa %s254, 1

</llo_original>
